<compile_context>
chip_gen: v5e
topology: v5e:2x2
jax: 0.10.0
libtpu: 0.0.40
codegen_flags: <defaults>
</compile_context>

<pallas_src>
import jax
import jax.numpy as jnp
from jax.experimental import pallas as pl
from jax.experimental.pallas import tpu as pltpu

LANE = 128           # lane width (last dim)
ROW_TILE = 16        # batch-tile granularity (bf16 sublane packing = 16 rows)


def _round_up(n, m):
    return ((n + m - 1) // m) * m


# ----------------------------- Pallas kernel --------------------------------
def actor_kernel(g_ref, s_ref, w1g_ref, w1s_ref, b1_ref,
                 w2_ref, b2_ref, w3_ref, b3_ref, o_ref):
    # Layer 1 (split matmul == concat([goal, state]) @ W1), f32 accumulation.
    h1 = jnp.dot(g_ref[...], w1g_ref[...], preferred_element_type=jnp.float32)
    h1 = h1 + jnp.dot(s_ref[...], w1s_ref[...],
                      preferred_element_type=jnp.float32)
    h1 = jnp.maximum(h1 + b1_ref[...], 0.0)          # bias + ReLU in f32

    # Layer 2
    h2 = jnp.dot(h1.astype(w2_ref.dtype), w2_ref[...],
                 preferred_element_type=jnp.float32)
    h2 = jnp.maximum(h2 + b2_ref[...], 0.0)

    # Layer 3 + DDPG wrap_action (tanh), f32 elementwise, lane-dense store.
    h3 = jnp.dot(h2.astype(w3_ref.dtype), w3_ref[...],
                 preferred_element_type=jnp.float32)
    o_ref[...] = jnp.tanh(h3 + b3_ref[...])


# ------------------------------ host wrapper ---------------------------------
def prepare_actor_params(raw_params, her_features):
    """Split W1 by input, zero-pad widths to 128 lanes, cast matmul weights to bf16."""
    w1, b1, w2, b2, w3, b3 = raw_params           # weights stored (in, out), f32
    h1, h2, act = w1.shape[1], w2.shape[1], w3.shape[1]
    h1p, h2p, ap = _round_up(h1, LANE), _round_up(h2, LANE), _round_up(act, LANE)

    def pad(a, rows, cols):
        return jnp.pad(a, ((0, rows - a.shape[0]), (0, cols - a.shape[1])))

    w1g = pad(w1[:her_features], her_features, h1p)
    w1s = pad(w1[her_features:], w1.shape[0] - her_features, h1p)
    b1p = pad(b1, 1, h1p)
    w2p = pad(w2, h1p, h2p)
    b2p = pad(b2, 1, h2p)
    w3p = pad(w3, h2p, ap)
    b3p = pad(b3, 1, ap)

    return (w1g.astype(jnp.bfloat16), w1s.astype(jnp.bfloat16), b1p,
            w2p.astype(jnp.bfloat16), b2p,
            w3p.astype(jnp.bfloat16), b3p)


def actor_forward(goal, state, prepared, action_size, *, block_b=256):
    """goal: (B, her_feat), state: (B, state_feat) -> actions (B, action_size)."""
    w1g, w1s, b1, w2, b2, w3, b3 = prepared
    B = goal.shape[0]

    tb = _round_up(min(block_b, _round_up(B, ROW_TILE)), ROW_TILE)
    bp = _round_up(B, tb)

    # bf16 matmul operands; pad batch to the tile multiple (padded rows sliced off).
    g = jnp.pad(goal.astype(jnp.bfloat16), ((0, bp - B), (0, 0)))
    s = jnp.pad(state.astype(jnp.bfloat16), ((0, bp - B), (0, 0)))

    fg, fs = g.shape[1], s.shape[1]
    h1p, h2p, ap = w1g.shape[1], w2.shape[1], w3.shape[1]

    def resident(arr):   # weights / biases stay VMEM-resident across grid steps
        return pl.BlockSpec(arr.shape, lambda i: (0, 0))

    # Scoped-VMEM budget: weights + double-buffered activation/output tiles
    # + f32 intermediates, with ~2x headroom, clamped to 48 MiB (v7x-safe).
    weight_bytes = sum(int(a.size) * a.dtype.itemsize
                       for a in (w1g, w1s, b1, w2, b2, w3, b3))
    act_bytes = 2 * tb * ((fg + fs) * 2 + ap * 4)       # double-buffered in/out
    interm_bytes = tb * (h1p + h2p) * 4
    vmem_bytes = min(max(2 * (weight_bytes + act_bytes + interm_bytes), 4 << 20),
                     48 << 20)

    out = pl.pallas_call(
        actor_kernel,
        out_shape=jax.ShapeDtypeStruct((bp, ap), jnp.float32),
        grid=(bp // tb,),
        in_specs=[
            pl.BlockSpec((tb, fg), lambda i: (i, 0)),   # goal tile
            pl.BlockSpec((tb, fs), lambda i: (i, 0)),   # state tile
            resident(w1g), resident(w1s), resident(b1),
            resident(w2), resident(b2),
            resident(w3), resident(b3),
        ],
        out_specs=pl.BlockSpec((tb, ap), lambda i: (i, 0)),
        compiler_params=pltpu.CompilerParams(
            dimension_semantics=("parallel",),
            vmem_limit_bytes=vmem_bytes),
    )(g, s, w1g, w1s, b1, w2, b2, w3, b3)

    return out[:B, :action_size]


# ------------------------ deterministic parameter init ----------------------
def make_noisy_linear(key, fan_in, fan_out):
    """Factorized-noise NoisyLinear params collapsed to an effective dense layer."""
    k_mu_w, k_mu_b, k_eps_i, k_eps_o = jax.random.split(key, 4)
    bound = 1.0 / jnp.sqrt(fan_in)
    w_mu = jax.random.uniform(k_mu_w, (fan_in, fan_out), jnp.float32, -bound, bound)
    b_mu = jax.random.uniform(k_mu_b, (1, fan_out), jnp.float32, -bound, bound)
    sigma0 = 0.5 / jnp.sqrt(fan_in)
    w_sigma = jnp.full((fan_in, fan_out), sigma0, jnp.float32)
    b_sigma = jnp.full((1, fan_out), sigma0, jnp.float32)

    def f(e):
        return jnp.sign(e) * jnp.sqrt(jnp.abs(e))

    eps_in = f(jax.random.normal(k_eps_i, (fan_in, 1), jnp.float32))
    eps_out = f(jax.random.normal(k_eps_o, (1, fan_out), jnp.float32))
    w_eff = w_mu + w_sigma * (eps_in * eps_out)   # == one sample_noise() call
    b_eff = b_mu + b_sigma * eps_out
    return w_eff, b_eff


def make_actor_params(key, state_features, her_features, hiddens, action_size):
    sizes = [state_features + her_features] + list(hiddens) + [action_size]
    keys = jax.random.split(key, len(sizes) - 1)
    params = []
    for k, fi, fo in zip(keys, sizes[:-1], sizes[1:]):
        w, b = make_noisy_linear(k, fi, fo)
        params.extend([w, b])
    return tuple(params)


def actor_reference(goal, state, raw_params):
    """Pure-JAX f32 reference of the torch forward (for tolerance check)."""
    w1, b1, w2, b2, w3, b3 = raw_params
    x = jnp.concatenate([goal, state], axis=-1)
    h1 = jnp.maximum(x @ w1 + b1, 0.0)
    h2 = jnp.maximum(h1 @ w2 + b2, 0.0)
    return jnp.tanh(h2 @ w3 + b3)


# ---------------------------------- main -------------------------------------
if __name__ == "__main__":
    key = jax.random.PRNGKey(0)
    k_params, k_goal, k_state = jax.random.split(key, 3)

    batch = 4
    state_features = 12
    her_features = 4           # cfg['her_state_features']
    hiddens = [128, 64]        # small stand-in for the default [400, 300]
    action_size = 8

    raw_params = make_actor_params(k_params, state_features, her_features,
                                   hiddens, action_size)
    prepared = prepare_actor_params(raw_params, her_features)

    goal = jax.random.normal(k_goal, (batch, her_features), jnp.float32)
    state = jax.random.normal(k_state, (batch, state_features), jnp.float32)

    out = actor_forward(goal, state, prepared, action_size)
    out = jax.block_until_ready(out)

    # sanity: correct shape, tanh-bounded, finite, matches f32 reference (bf16 tol)
    assert out.shape == (batch, action_size)
    assert bool(jnp.all(jnp.isfinite(out)))
    assert bool(jnp.all(jnp.abs(out) <= 1.0))
    ref = actor_reference(goal, state, raw_params)
    assert bool(jnp.all(jnp.abs(out - ref) < 5e-2)), "mismatch vs f32 reference"

    print("KERNEL_OK")
</pallas_src>

<mosaic_0001>
module attributes {stable_mosaic.version = 11 : i64} {
  func.func @actor_kernel(%arg0: i32, %arg1: memref<16x4xbf16, #tpu.memory_space<vmem>>, %arg2: memref<16x12xbf16, #tpu.memory_space<vmem>>, %arg3: memref<4x128xbf16, #tpu.memory_space<vmem>>, %arg4: memref<12x128xbf16, #tpu.memory_space<vmem>>, %arg5: memref<1x128xf32, #tpu.memory_space<vmem>>, %arg6: memref<128x128xbf16, #tpu.memory_space<vmem>>, %arg7: memref<1x128xf32, #tpu.memory_space<vmem>>, %arg8: memref<128x128xbf16, #tpu.memory_space<vmem>>, %arg9: memref<1x128xf32, #tpu.memory_space<vmem>>, %arg10: memref<16x128xf32, #tpu.memory_space<vmem>>) attributes {dimension_semantics = [#tpu.dimension_semantics<parallel>], iteration_bounds = array<i64: 1>, scalar_prefetch = 0 : i64, scratch_operands = 0 : i64, tpu.core_type = #tpu.core_type<tc>, window_params = [{transform_indices = @transform_0, window_bounds = array<i64: 16, 4>}, {transform_indices = @transform_1, window_bounds = array<i64: 16, 12>}, {pipeline_mode = #tpu.pipeline_mode<synchronous>, transform_indices = @transform_2, window_bounds = array<i64: 4, 128>}, {pipeline_mode = #tpu.pipeline_mode<synchronous>, transform_indices = @transform_3, window_bounds = array<i64: 12, 128>}, {pipeline_mode = #tpu.pipeline_mode<synchronous>, transform_indices = @transform_4, window_bounds = array<i64: 1, 128>}, {pipeline_mode = #tpu.pipeline_mode<synchronous>, transform_indices = @transform_5, window_bounds = array<i64: 128, 128>}, {pipeline_mode = #tpu.pipeline_mode<synchronous>, transform_indices = @transform_6, window_bounds = array<i64: 1, 128>}, {pipeline_mode = #tpu.pipeline_mode<synchronous>, transform_indices = @transform_7, window_bounds = array<i64: 128, 128>}, {pipeline_mode = #tpu.pipeline_mode<synchronous>, transform_indices = @transform_8, window_bounds = array<i64: 1, 128>}, {transform_indices = @transform_9, window_bounds = array<i64: 16, 128>}]} {
    %c0 = arith.constant 0 : index
    %c0_0 = arith.constant 0 : index
    %0 = vector.load %arg1[%c0, %c0_0] : memref<16x4xbf16, #tpu.memory_space<vmem>>, vector<16x4xbf16>
    %c0_1 = arith.constant 0 : index
    %c0_2 = arith.constant 0 : index
    %1 = vector.load %arg3[%c0_1, %c0_2] : memref<4x128xbf16, #tpu.memory_space<vmem>>, vector<4x128xbf16>
    %cst = arith.constant dense<0.000000e+00> : vector<16x128xf32>
    %2 = tpu.matmul %0, %1, %cst {dimension_numbers = #tpu.dot_dimension_numbers<[1], [0], [0], [1], [0, 0, 1, 1], [], []>} : vector<16x4xbf16>, vector<4x128xbf16>, vector<16x128xf32> -> vector<16x128xf32>
    %c0_3 = arith.constant 0 : index
    %c0_4 = arith.constant 0 : index
    %3 = vector.load %arg2[%c0_3, %c0_4] : memref<16x12xbf16, #tpu.memory_space<vmem>>, vector<16x12xbf16>
    %c0_5 = arith.constant 0 : index
    %c0_6 = arith.constant 0 : index
    %4 = vector.load %arg4[%c0_5, %c0_6] : memref<12x128xbf16, #tpu.memory_space<vmem>>, vector<12x128xbf16>
    %cst_7 = arith.constant dense<0.000000e+00> : vector<16x128xf32>
    %5 = tpu.matmul %3, %4, %cst_7 {dimension_numbers = #tpu.dot_dimension_numbers<[1], [0], [0], [1], [0, 0, 1, 1], [], []>} : vector<16x12xbf16>, vector<12x128xbf16>, vector<16x128xf32> -> vector<16x128xf32>
    %6 = arith.addf %2, %5 : vector<16x128xf32>
    %c0_8 = arith.constant 0 : index
    %c0_9 = arith.constant 0 : index
    %7 = vector.load %arg5[%c0_8, %c0_9] : memref<1x128xf32, #tpu.memory_space<vmem>>, vector<1x128xf32>
    %8 = vector.broadcast %7 : vector<1x128xf32> to vector<16x128xf32>
    %9 = arith.addf %6, %8 : vector<16x128xf32>
    %cst_10 = arith.constant 0.000000e+00 : f32
    %10 = vector.broadcast %cst_10 : f32 to vector<16x128xf32>
    %11 = arith.maximumf %9, %10 : vector<16x128xf32>
    %12 = arith.truncf %11 : vector<16x128xf32> to vector<16x128xbf16>
    %c0_11 = arith.constant 0 : index
    %c0_12 = arith.constant 0 : index
    %13 = vector.load %arg6[%c0_11, %c0_12] : memref<128x128xbf16, #tpu.memory_space<vmem>>, vector<128x128xbf16>
    %cst_13 = arith.constant dense<0.000000e+00> : vector<16x128xf32>
    %14 = tpu.matmul %12, %13, %cst_13 {dimension_numbers = #tpu.dot_dimension_numbers<[1], [0], [0], [1], [0, 0, 1, 1], [], []>} : vector<16x128xbf16>, vector<128x128xbf16>, vector<16x128xf32> -> vector<16x128xf32>
    %c0_14 = arith.constant 0 : index
    %c0_15 = arith.constant 0 : index
    %15 = vector.load %arg7[%c0_14, %c0_15] : memref<1x128xf32, #tpu.memory_space<vmem>>, vector<1x128xf32>
    %16 = vector.broadcast %15 : vector<1x128xf32> to vector<16x128xf32>
    %17 = arith.addf %14, %16 : vector<16x128xf32>
    %cst_16 = arith.constant 0.000000e+00 : f32
    %18 = vector.broadcast %cst_16 : f32 to vector<16x128xf32>
    %19 = arith.maximumf %17, %18 : vector<16x128xf32>
    %20 = arith.truncf %19 : vector<16x128xf32> to vector<16x128xbf16>
    %c0_17 = arith.constant 0 : index
    %c0_18 = arith.constant 0 : index
    %21 = vector.load %arg8[%c0_17, %c0_18] : memref<128x128xbf16, #tpu.memory_space<vmem>>, vector<128x128xbf16>
    %cst_19 = arith.constant dense<0.000000e+00> : vector<16x128xf32>
    %22 = tpu.matmul %20, %21, %cst_19 {dimension_numbers = #tpu.dot_dimension_numbers<[1], [0], [0], [1], [0, 0, 1, 1], [], []>} : vector<16x128xbf16>, vector<128x128xbf16>, vector<16x128xf32> -> vector<16x128xf32>
    %c0_20 = arith.constant 0 : index
    %c0_21 = arith.constant 0 : index
    %23 = vector.load %arg9[%c0_20, %c0_21] : memref<1x128xf32, #tpu.memory_space<vmem>>, vector<1x128xf32>
    %24 = vector.broadcast %23 : vector<1x128xf32> to vector<16x128xf32>
    %25 = arith.addf %22, %24 : vector<16x128xf32>
    %26 = math.tanh %25 : vector<16x128xf32>
    %c0_22 = arith.constant 0 : index
    %c0_23 = arith.constant 0 : index
    %27 = vector.load %arg10[%c0_22, %c0_23] : memref<16x128xf32, #tpu.memory_space<vmem>>, vector<16x128xf32>
    tpu.vector_store %arg10[%c0_22, %c0_23], %26 {strides = array<i32>} : memref<16x128xf32, #tpu.memory_space<vmem>>, vector<16x128xf32>,
    return
  }
  func.func @transform_0(%arg0: i32) -> (i32, i32) {
    %c0_i32 = arith.constant 0 : i32
    %c0_i32_0 = arith.constant 0 : i32
    return %arg0, %c0_i32 : i32, i32
  }
  func.func @transform_1(%arg0: i32) -> (i32, i32) {
    %c0_i32 = arith.constant 0 : i32
    %c0_i32_0 = arith.constant 0 : i32
    return %arg0, %c0_i32 : i32, i32
  }
  func.func @transform_2(%arg0: i32) -> (i32, i32) {
    %c0_i32 = arith.constant 0 : i32
    %c0_i32_0 = arith.constant 0 : i32
    %c0_i32_1 = arith.constant 0 : i32
    return %c0_i32, %c0_i32_0 : i32, i32
  }
  func.func @transform_3(%arg0: i32) -> (i32, i32) {
    %c0_i32 = arith.constant 0 : i32
    %c0_i32_0 = arith.constant 0 : i32
    %c0_i32_1 = arith.constant 0 : i32
    return %c0_i32, %c0_i32_0 : i32, i32
  }
  func.func @transform_4(%arg0: i32) -> (i32, i32) {
    %c0_i32 = arith.constant 0 : i32
    %c0_i32_0 = arith.constant 0 : i32
    %c0_i32_1 = arith.constant 0 : i32
    return %c0_i32, %c0_i32_0 : i32, i32
  }
  func.func @transform_5(%arg0: i32) -> (i32, i32) {
    %c0_i32 = arith.constant 0 : i32
    %c0_i32_0 = arith.constant 0 : i32
    %c0_i32_1 = arith.constant 0 : i32
    return %c0_i32, %c0_i32_0 : i32, i32
  }
  func.func @transform_6(%arg0: i32) -> (i32, i32) {
    %c0_i32 = arith.constant 0 : i32
    %c0_i32_0 = arith.constant 0 : i32
    %c0_i32_1 = arith.constant 0 : i32
    return %c0_i32, %c0_i32_0 : i32, i32
  }
  func.func @transform_7(%arg0: i32) -> (i32, i32) {
    %c0_i32 = arith.constant 0 : i32
    %c0_i32_0 = arith.constant 0 : i32
    %c0_i32_1 = arith.constant 0 : i32
    return %c0_i32, %c0_i32_0 : i32, i32
  }
  func.func @transform_8(%arg0: i32) -> (i32, i32) {
    %c0_i32 = arith.constant 0 : i32
    %c0_i32_0 = arith.constant 0 : i32
    %c0_i32_1 = arith.constant 0 : i32
    return %c0_i32, %c0_i32_0 : i32, i32
  }
  func.func @transform_9(%arg0: i32) -> (i32, i32) {
    %c0_i32 = arith.constant 0 : i32
    %c0_i32_0 = arith.constant 0 : i32
    return %arg0, %c0_i32 : i32, i32
  }
}

</mosaic_0001>

<llo_original>
// kernel: tpu_custom_call.1
$region0: #{tpu_custom_call.1}
  #allocation0 [shape = 'u32[]', space=smem, size = 0x4, offset = 0x4, fixed_abs, tag = 'smem constant byte address 0x4 - core index']
  #allocation1 [shape = 'u32[72,128]{1,0:T(1,128)}', space=vmem, size = 0x9000, scoped, tag = 'internal scratch']
  %s0 = inlined_call_operand.vmem [shape: bf16[16,4], index: 0, kind: input, shape index: {}]
  %s1 = inlined_call_operand.vmem [shape: bf16[16,12], index: 1, kind: input, shape index: {}]
  %s2 = inlined_call_operand.vmem [shape: bf16[4,128], index: 2, kind: input, shape index: {}]
  %s3 = inlined_call_operand.hbm [shape: bf16[12,128], index: 3, kind: input, shape index: {}]
  %s4 = inlined_call_operand.vmem [shape: f32[1,128], index: 4, kind: input, shape index: {}]
  %s5 = inlined_call_operand.hbm [shape: bf16[128,128], index: 5, kind: input, shape index: {}]
  %s6 = inlined_call_operand.vmem [shape: f32[1,128], index: 6, kind: input, shape index: {}]
  %s7 = inlined_call_operand.hbm [shape: bf16[128,128], index: 7, kind: input, shape index: {}]
  %s8 = inlined_call_operand.vmem [shape: f32[1,128], index: 8, kind: input, shape index: {}]
  %s9 = inlined_call_operand.hbm [shape: f32[16,128], index: 9, kind: output, shape index: {}]
  %s10 = sld [smem:[#allocation0]]
  $region58: #{tpu_custom_call.1} parent=0
    _
  %s12 = ssub.s32 1, %s10
  %s13 = scalar_select 0, %s12, %s10
  $region1: #{tpu_custom_call.1} parent=0
    #allocation2 [shape = 'u8[4096]{0}', space=vmem, size = 0x1000, scoped, tag = 'input window, operand 3, single buffered']
    #allocation3 [shape = 's32[1]{0}', space=sflag, size = 0x4, scoped, tag = 'scoped memory for tpu_custom_call.1']
    #allocation4 [shape = 's32[1]{0}', space=sflag, size = 0x4, scoped, tag = 'scoped memory for tpu_custom_call.1']
    #allocation5 [shape = 'u8[32768]{0}', space=vmem, size = 0x8000, scoped, tag = 'input window, operand 5, single buffered']
    #allocation6 [shape = 's32[1]{0}', space=sflag, size = 0x4, scoped, tag = 'scoped memory for tpu_custom_call.1']
    #allocation7 [shape = 'u8[32768]{0}', space=vmem, size = 0x8000, scoped, tag = 'input window, operand 7, single buffered']
    #allocation8 [shape = 'u8[8192]{0}', space=vmem, size = 0x2000, scoped, tag = 'output window, operand 0, single buffered']
    %14 = vsyncpa [#allocation3], 0
    %15 = vsyncpa [#allocation6], 0
    %16 = vsyncpa [#allocation4], 0
    // Predicated region
    $region2: #{tpu_custom_call.1} parent=1 // pred_check
      _
    $region3: #{tpu_custom_call.1} parent=1 // pred_check_branch
      %18 = sbr.rel (0) target = $region5
    $region4: #{tpu_custom_call.1} parent=1 // pred_region
      _
    $region5: #{tpu_custom_call.1} parent=1 // pred_fallthru
      _
    // Predicated region
    $region6: #{tpu_custom_call.1} parent=1 // pred_check
      _
    $region7: #{tpu_custom_call.1} parent=1 // pred_check_branch
      %20 = sbr.rel (0) target = $region9
    $region8: #{tpu_custom_call.1} parent=1 // pred_region
      _
    $region9: #{tpu_custom_call.1} parent=1 // pred_fallthru
      _
    // Predicated region
    $region10: #{tpu_custom_call.1} parent=1 // pred_check
      _
    $region11: #{tpu_custom_call.1} parent=1 // pred_check_branch
      %22 = sbr.rel (0) target = $region13
    $region12: #{tpu_custom_call.1} parent=1 // pred_region
      _
    $region13: #{tpu_custom_call.1} parent=1 // pred_fallthru
      _
    // Predicated region
    $region14: #{tpu_custom_call.1} parent=1 // pred_check
      _
    $region15: #{tpu_custom_call.1} parent=1 // pred_check_branch
      %24 = sbr.rel (0) target = $region17
    $region16: #{tpu_custom_call.1} parent=1 // pred_region
      %26 = vsyncadd [#allocation3], 0
      %s27 = sshll.u32 %s3, 4
      %s28 = int_to_ptr.hbm [resolvable:$true] %s27
      %s29 = sshll.u32 [#allocation2], 4
      %s30 = int_to_ptr.vmem [resolvable:$true] %s29
      %35 = dma.hbm_to_vmem [thread:$0]  %s28, 128, %s30, [#allocation3], 64, 64, 4
    $region17: #{tpu_custom_call.1} parent=1 // pred_fallthru
      _
    // Predicated region
    $region18: #{tpu_custom_call.1} parent=1 // pred_check
      _
    $region19: #{tpu_custom_call.1} parent=1 // pred_check_branch
      %37 = sbr.rel (0) target = $region21
    $region20: #{tpu_custom_call.1} parent=1 // pred_region
      _
    $region21: #{tpu_custom_call.1} parent=1 // pred_fallthru
      _
    // Predicated region
    $region22: #{tpu_custom_call.1} parent=1 // pred_check
      _
    $region23: #{tpu_custom_call.1} parent=1 // pred_check_branch
      %39 = sbr.rel (0) target = $region25
    $region24: #{tpu_custom_call.1} parent=1 // pred_region
      %41 = vsyncadd [#allocation6], 0
      %s42 = sshll.u32 %s5, 4
      %s43 = int_to_ptr.hbm [resolvable:$true] %s42
      %s44 = sshll.u32 [#allocation5], 4
      %s45 = int_to_ptr.vmem [resolvable:$true] %s44
      %50 = dma.hbm_to_vmem [thread:$0]  %s43, 1024, %s45, [#allocation6], 64, 64, 4
    $region25: #{tpu_custom_call.1} parent=1 // pred_fallthru
      _
    // Predicated region
    $region26: #{tpu_custom_call.1} parent=1 // pred_check
      _
    $region27: #{tpu_custom_call.1} parent=1 // pred_check_branch
      %52 = sbr.rel (0) target = $region29
    $region28: #{tpu_custom_call.1} parent=1 // pred_region
      _
    $region29: #{tpu_custom_call.1} parent=1 // pred_fallthru
      _
    // Predicated region
    $region30: #{tpu_custom_call.1} parent=1 // pred_check
      _
    $region31: #{tpu_custom_call.1} parent=1 // pred_check_branch
      %54 = sbr.rel (0) target = $region33
    $region32: #{tpu_custom_call.1} parent=1 // pred_region
      %56 = vsyncadd [#allocation6], 0
      %s57 = sshll.u32 %s7, 4
      %s58 = int_to_ptr.hbm [resolvable:$true] %s57
      %s59 = sshll.u32 [#allocation7], 4
      %s60 = int_to_ptr.vmem [resolvable:$true] %s59
      %65 = dma.hbm_to_vmem [thread:$0]  %s58, 1024, %s60, [#allocation6], 64, 64, 4
    $region33: #{tpu_custom_call.1} parent=1 // pred_fallthru
      _
    // Predicated region
    $region34: #{tpu_custom_call.1} parent=1 // pred_check
      _
    $region35: #{tpu_custom_call.1} parent=1 // pred_check_branch
      %67 = sbr.rel (0) target = $region37
    $region36: #{tpu_custom_call.1} parent=1 // pred_region
      _
    $region37: #{tpu_custom_call.1} parent=1 // pred_fallthru
      _
    // Predicated region
    $region38: #{tpu_custom_call.1} parent=1 // pred_check
      _
    $region39: #{tpu_custom_call.1} parent=1 // pred_check_branch
      %69 = sbr.rel (0) target = $region41
    $region40: #{tpu_custom_call.1} parent=1 // pred_region
      %71 = dma.done [#allocation3], 128
    $region41: #{tpu_custom_call.1} parent=1 // pred_fallthru
      _
    // Predicated region
    $region42: #{tpu_custom_call.1} parent=1 // pred_check
      _
    $region43: #{tpu_custom_call.1} parent=1 // pred_check_branch
      %73 = sbr.rel (0) target = $region45
    $region44: #{tpu_custom_call.1} parent=1 // pred_region
      %75 = dma.done [#allocation6], 1024
    $region45: #{tpu_custom_call.1} parent=1 // pred_fallthru
      _
    // Predicated region
    $region46: #{tpu_custom_call.1} parent=1 // pred_check
      _
    $region47: #{tpu_custom_call.1} parent=1 // pred_check_branch
      %77 = sbr.rel (0) target = $region49
    $region48: #{tpu_custom_call.1} parent=1 // pred_region
      %79 = dma.done [#allocation6], 1024
    $region49: #{tpu_custom_call.1} parent=1 // pred_fallthru
      _
    %v81 = vld [vmem:[%s0] sm:$0xf]
    %v82 = vld [vmem:[%s0 + $0x4] sm:$0xf]
    %v83 = vld [vmem:[%s2] sm:$0x3]
    %v84 = vld [vmem:[%s1] sm:$0xf]
    %v85 = vld [vmem:[%s1 + $0x4] sm:$0xf]
    %v86 = vld [vmem:[#allocation2] sm:$0xf]
    %v87 = vld [vmem:[#allocation2 + $0x4] sm:$0x3]
    %v90 = vunpack.c.l.b16 %v84
    %v91 = vunpack.c.l.b16 %v85
    %v92 = vpack.c.b16 %v91, %v90
    %v95 = vunpack.c.l.b16 %v86
    %v96 = vunpack.c.l.b16 %v87
    %v97 = vpack.c.b16 %v96, %v95
    %vm98 = vcmask 97280
    %v100 = vsel %vm98, %v92, 0
    %vm102 = vcmask 1045504
    %v104 = vsel %vm102, %v97, 0
    %106 = vmatpush.bf16.msra.mxu0 0
    %107 = vmatpush.bf16.msra.mxu0 0
    %108 = vmatpush.bf16.msra.mxu0 0
    %109 = vmatpush.bf16.msra.mxu0 0
    %110 = vmatpush.bf16.msra.mxu0 0
    %111 = vmatpush.bf16.msra.mxu0 0
    %112 = vmatpush.bf16.msra.mxu0 0
    %113 = vmatpush.bf16.msra.mxu0 %v104
    %114 = vmatmul.bf16.gmra.mxu0 %v100
    %v115 = vpop.f32.mrf.mxu0
    %v116 = vadd.f32 0.0, %v115
    %v117 = vpop.f32.mrf.mxu0
    %v118 = vadd.f32 0.0, %v117
    %119 = vdwg.mxu0
    %v122 = vunpack.c.l.b16 %v81
    %v123 = vunpack.c.l.b16 %v82
    %v124 = vpack.c.b16 %v123, %v122
    %vm125 = vcmask 31744
    %v127 = vsel %vm125, %v124, 0
    %vm129 = vcmask 1041408
    %v131 = vsel %vm129, %v83, 0
    %133 = vmatpush.bf16.msra.mxu0 0
    %134 = vmatpush.bf16.msra.mxu0 0
    %135 = vmatpush.bf16.msra.mxu0 0
    %136 = vmatpush.bf16.msra.mxu0 0
    %137 = vmatpush.bf16.msra.mxu0 0
    %138 = vmatpush.bf16.msra.mxu0 0
    %139 = vmatpush.bf16.msra.mxu0 0
    %140 = vmatpush.bf16.msra.mxu0 %v131
    %141 = vmatmul.bf16.gmra.mxu0 %v127
    %v142 = vpop.f32.mrf.mxu0
    %v143 = vadd.f32 %v116, %v142
    %v144 = vpop.f32.mrf.mxu0
    %v145 = vadd.f32 %v118, %v144
    %146 = vdwg.mxu0
    %v147 = vld [vmem:[%s4] sm:$0x1]
    %v149 = vperm.slane %v147, 0
    %v151 = vadd.f32 %v143, %v149
    %v152 = vadd.f32 %v145, %v149
    %v153 = vmax.f32 %v151, 0.0
    %v154 = vmax.f32 %v152, 0.0
    %v155 = vpack.c.bf16 %v154, %v153
    %v156 = vld [vmem:[#allocation5] sm:$0xf]
    %v157 = vld [vmem:[#allocation5 + $0x4] sm:$0xf]
    %v158 = vld [vmem:[#allocation5 + $0x8] sm:$0xf]
    %v159 = vld [vmem:[#allocation5 + $0xc] sm:$0xf]
    %v160 = vld [vmem:[#allocation5 + $0x10] sm:$0xf]
    %v161 = vld [vmem:[#allocation5 + $0x14] sm:$0xf]
    %v162 = vld [vmem:[#allocation5 + $0x18] sm:$0xf]
    %v163 = vld [vmem:[#allocation5 + $0x1c] sm:$0xf]
    %v164 = vld [vmem:[#allocation5 + $0x20] sm:$0xf]
    %v165 = vld [vmem:[#allocation5 + $0x24] sm:$0xf]
    %v166 = vld [vmem:[#allocation5 + $0x28] sm:$0xf]
    %v167 = vld [vmem:[#allocation5 + $0x2c] sm:$0xf]
    %v168 = vld [vmem:[#allocation5 + $0x30] sm:$0xf]
    %v169 = vld [vmem:[#allocation5 + $0x34] sm:$0xf]
    %v170 = vld [vmem:[#allocation5 + $0x38] sm:$0xf]
    %v171 = vld [vmem:[#allocation5 + $0x3c] sm:$0xf]
    %v172 = vld [vmem:[%s6] sm:$0x1]
    %v174 = vperm.slane %v172, 0
    %v192 = vunpack.c.l.b16 %v156
    %v193 = vunpack.c.l.b16 %v157
    %v194 = vunpack.c.l.b16 %v158
    %v195 = vunpack.c.l.b16 %v159
    %v196 = vunpack.c.l.b16 %v160
    %v197 = vunpack.c.l.b16 %v161
    %v198 = vunpack.c.l.b16 %v162
    %v199 = vunpack.c.l.b16 %v163
    %v200 = vunpack.c.l.b16 %v164
    %v201 = vunpack.c.l.b16 %v165
    %v202 = vunpack.c.l.b16 %v166
    %v203 = vunpack.c.l.b16 %v167
    %v204 = vunpack.c.l.b16 %v168
    %v205 = vunpack.c.l.b16 %v169
    %v206 = vunpack.c.l.b16 %v170
    %v207 = vunpack.c.l.b16 %v171
    %v208 = vpack.c.b16 %v193, %v192
    %v209 = vpack.c.b16 %v195, %v194
    %v210 = vpack.c.b16 %v197, %v196
    %v211 = vpack.c.b16 %v199, %v198
    %v212 = vpack.c.b16 %v201, %v200
    %v213 = vpack.c.b16 %v203, %v202
    %v214 = vpack.c.b16 %v205, %v204
    %v215 = vpack.c.b16 %v207, %v206
    %224 = vmatpush.bf16.msra.mxu0 %v215
    %225 = vmatpush.bf16.msra.mxu0 %v214
    %226 = vmatpush.bf16.msra.mxu0 %v213
    %227 = vmatpush.bf16.msra.mxu0 %v212
    %228 = vmatpush.bf16.msra.mxu0 %v211
    %229 = vmatpush.bf16.msra.mxu0 %v210
    %230 = vmatpush.bf16.msra.mxu0 %v209
    %231 = vmatpush.bf16.msra.mxu0 %v208
    %232 = vmatmul.bf16.gmra.mxu0 %v155
    %v233 = vpop.f32.mrf.mxu0
    %v234 = vadd.f32 %v174, %v233
    %v235 = vpop.f32.mrf.mxu0
    %v236 = vadd.f32 %v174, %v235
    %237 = vdwg.mxu0
    %v238 = vmax.f32 %v234, 0.0
    %v239 = vmax.f32 %v236, 0.0
    %v240 = vpack.c.bf16 %v239, %v238
    %v241 = vld [vmem:[#allocation7] sm:$0xf]
    %v242 = vld [vmem:[#allocation7 + $0x4] sm:$0xf]
    %v243 = vld [vmem:[#allocation7 + $0x8] sm:$0xf]
    %v244 = vld [vmem:[#allocation7 + $0xc] sm:$0xf]
    %v245 = vld [vmem:[#allocation7 + $0x10] sm:$0xf]
    %v246 = vld [vmem:[#allocation7 + $0x14] sm:$0xf]
    %v247 = vld [vmem:[#allocation7 + $0x18] sm:$0xf]
    %v248 = vld [vmem:[#allocation7 + $0x1c] sm:$0xf]
    %v249 = vld [vmem:[#allocation7 + $0x20] sm:$0xf]
    %v250 = vld [vmem:[#allocation7 + $0x24] sm:$0xf]
    %v251 = vld [vmem:[#allocation7 + $0x28] sm:$0xf]
    %v252 = vld [vmem:[#allocation7 + $0x2c] sm:$0xf]
    %v253 = vld [vmem:[#allocation7 + $0x30] sm:$0xf]
    %v254 = vld [vmem:[#allocation7 + $0x34] sm:$0xf]
    %v255 = vld [vmem:[#allocation7 + $0x38] sm:$0xf]
    %v256 = vld [vmem:[#allocation7 + $0x3c] sm:$0xf]
    %v257 = vld [vmem:[%s8] sm:$0x1]
    %v259 = vperm.slane %v257, 0
    %v277 = vunpack.c.l.b16 %v241
    %v278 = vunpack.c.l.b16 %v242
    %v279 = vunpack.c.l.b16 %v243
    %v280 = vunpack.c.l.b16 %v244
    %v281 = vunpack.c.l.b16 %v245
    %v282 = vunpack.c.l.b16 %v246
    %v283 = vunpack.c.l.b16 %v247
    %v284 = vunpack.c.l.b16 %v248
    %v285 = vunpack.c.l.b16 %v249
    %v286 = vunpack.c.l.b16 %v250
    %v287 = vunpack.c.l.b16 %v251
    %v288 = vunpack.c.l.b16 %v252
    %v289 = vunpack.c.l.b16 %v253
    %v290 = vunpack.c.l.b16 %v254
    %v291 = vunpack.c.l.b16 %v255
    %v292 = vunpack.c.l.b16 %v256
    %v293 = vpack.c.b16 %v278, %v277
    %v294 = vpack.c.b16 %v280, %v279
    %v295 = vpack.c.b16 %v282, %v281
    %v296 = vpack.c.b16 %v284, %v283
    %v297 = vpack.c.b16 %v286, %v285
    %v298 = vpack.c.b16 %v288, %v287
    %v299 = vpack.c.b16 %v290, %v289
    %v300 = vpack.c.b16 %v292, %v291
    %309 = vmatpush.bf16.msra.mxu0 %v300
    %310 = vmatpush.bf16.msra.mxu0 %v299
    %311 = vmatpush.bf16.msra.mxu0 %v298
    %312 = vmatpush.bf16.msra.mxu0 %v297
    %313 = vmatpush.bf16.msra.mxu0 %v296
    %314 = vmatpush.bf16.msra.mxu0 %v295
    %315 = vmatpush.bf16.msra.mxu0 %v294
    %316 = vmatpush.bf16.msra.mxu0 %v293
    %317 = vmatmul.bf16.gmra.mxu0 %v240
    %v318 = vpop.f32.mrf.mxu0
    %v319 = vadd.f32 %v259, %v318
    %v320 = vpop.f32.mrf.mxu0
    %v321 = vadd.f32 %v259, %v320
    %322 = vdwg.mxu0
    %v323 = vtanh.pop %v319
    %v324 = vtanh.pop %v321
    %325 = vst [vmem:[#allocation8] sm:$0xff] %v323
    %326 = vst [vmem:[#allocation8 + $0x8] sm:$0xff] %v324
    // Predicated region
    $region50: #{tpu_custom_call.1} parent=1 // pred_check
      _
    $region51: #{tpu_custom_call.1} parent=1 // pred_check_branch
      %328 = sbr.rel (0) target = $region53
    $region52: #{tpu_custom_call.1} parent=1 // pred_region
      %330 = vsyncadd [#allocation4], 0
      %s331 = sshll.u32 [#allocation8], 4
      %s332 = int_to_ptr.vmem [resolvable:$true] %s331
      %s333 = sshll.u32 %s9, 4
      %s334 = int_to_ptr.hbm [resolvable:$true] %s333
      %339 = dma.vmem_to_hbm [thread:$0]  %s332, 256, %s334, [#allocation4], 128, 128, 8
    $region53: #{tpu_custom_call.1} parent=1 // pred_fallthru
      _
    // Predicated region
    $region54: #{tpu_custom_call.1} parent=1 // pred_check
      _
    $region55: #{tpu_custom_call.1} parent=1 // pred_check_branch
      %341 = sbr.rel (0) target = $region57
    $region56: #{tpu_custom_call.1} parent=1 // pred_region
      %343 = dma.done [#allocation4], 256
    $region57: #{tpu_custom_call.1} parent=1 // pred_fallthru
      _
    %344 = vsyncpa [#allocation3], 1
    %345 = vsyncpa [#allocation6], 1
    %346 = vsyncpa [#allocation4], 1

</llo_original>
